<compile_context>
chip_gen: v6e
topology: v6e:2x2x1
jax: 0.10.0
libtpu: 0.0.40
codegen_flags: <defaults>
</compile_context>

<pallas_src>
import jax
import jax.numpy as jnp
from jax.experimental import pallas as pl
from jax.experimental.pallas import tpu as pltpu


def _round_up(x, m):
    return ((x + m - 1) // m) * m


def linear_relu_kernel(x_ref, w_ref, b_ref, o_ref, acc_ref):
    # x_ref: (tm, tk) bf16, w_ref: (tk, tn) bf16, b_ref: (1, tn) f32,
    # o_ref: (tm, tn) f32, acc_ref: (tm, tn) f32 scratch.
    k = pl.program_id(2)

    @pl.when(k == 0)
    def _():
        acc_ref[...] = jnp.zeros_like(acc_ref)

    acc_ref[...] += jnp.dot(
        x_ref[...], w_ref[...], preferred_element_type=jnp.float32
    )

    @pl.when(k == pl.num_programs(2) - 1)
    def _():
        # Fused epilogue: bias (broadcast over rows) + ReLU, all in f32.
        o_ref[...] = jnp.maximum(acc_ref[...] + b_ref[...], 0.0).astype(o_ref.dtype)


def linear_relu(x, weight, bias):
    """y = relu(x @ weight.T + bias).

    x: (M, K) f32, weight: (N, K) f32 (PyTorch nn.Linear layout), bias: (N,) f32.
    Returns (M, N) f32.
    """
    M, K = x.shape
    N, K2 = weight.shape
    assert K == K2 and bias.shape == (N,)

    # ---- Tile selection (MXU-friendly, VMEM-bounded across v5e/v6e/v7x) ----
    # tm: sublane multiple of 8, up to 256 rows.
    # tn: lane multiple of 128, up to 512 (unmasked lane-dense stores).
    # tk: full K when small (single reduction step), else 512-wide K tiles.
    tm = min(_round_up(M, 8), 256)
    tn = min(_round_up(N, 128), 512)
    if K <= 1024:
        tk = _round_up(K, 128)
    else:
        tk = 512

    m_pad = _round_up(M, tm)
    n_pad = _round_up(N, tn)
    k_pad = _round_up(K, tk)

    # Zero-pad so the grid covers everything; padded rows/cols sliced off
    # below, padded K contributes zeros to the accumulation (harmless).
    w_t = weight.T  # (K, N)
    if m_pad != M or k_pad != K:
        x = jnp.pad(x, ((0, m_pad - M), (0, k_pad - K)))
    if k_pad != K or n_pad != N:
        w_t = jnp.pad(w_t, ((0, k_pad - K), (0, n_pad - N)))
    if n_pad != N:
        bias = jnp.pad(bias, (0, n_pad - N))

    # bf16 inputs (halve HBM traffic, 2x MXU throughput); accumulate in f32.
    x_bf = x.astype(jnp.bfloat16)
    w_bf = w_t.astype(jnp.bfloat16)
    b2d = bias.reshape(1, n_pad).astype(jnp.float32)

    # Grid: N-tiles outer, M-tiles inner, K-tiles innermost (reduction).
    # The W column tile depends only on (j, k), so it stays VMEM-resident
    # while x row tiles stream through the inner M loop.
    grid = (n_pad // tn, m_pad // tm, k_pad // tk)

    # Double-buffered tile set + f32 accumulator (+ headroom), under v7x budget.
    tile_bytes = (
        2 * (tm * tk * 2 + tk * tn * 2 + tm * tn * 4 + tn * 4)  # dbl-buffered I/O
        + tm * tn * 4                                            # acc scratch
    )
    vmem_limit = min(tile_bytes + (8 << 20), 48 << 20)

    out_padded = pl.pallas_call(
        linear_relu_kernel,
        out_shape=jax.ShapeDtypeStruct((m_pad, n_pad), jnp.float32),
        grid_spec=pltpu.PrefetchScalarGridSpec(
            num_scalar_prefetch=0,
            grid=grid,
            in_specs=[
                pl.BlockSpec((tm, tk), lambda j, i, k: (i, k)),  # x row/K tile
                pl.BlockSpec((tk, tn), lambda j, i, k: (k, j)),  # W K/col tile
                pl.BlockSpec((1, tn), lambda j, i, k: (0, j)),   # bias col tile
            ],
            out_specs=pl.BlockSpec((tm, tn), lambda j, i, k: (i, j)),
            scratch_shapes=[pltpu.VMEM((tm, tn), jnp.float32)],
        ),
        compiler_params=pltpu.CompilerParams(
            dimension_semantics=("parallel", "parallel", "arbitrary"),
            vmem_limit_bytes=vmem_limit,
        ),
    )(x_bf, w_bf, b2d)

    return out_padded[:M, :N]


if __name__ == "__main__":
    in_dim = 512
    out_dim = 256
    batch = 8  # overhead-dominated at this demo size; tiling pays off for large M

    key = jax.random.PRNGKey(0)
    kx, kw, kb = jax.random.split(key, 3)

    x = jax.random.normal(kx, (batch, in_dim), dtype=jnp.float32)
    # nn.Linear-shaped params: weight (out_dim, in_dim), bias (out_dim,)
    bound = 1.0 / (in_dim ** 0.5)
    weight = jax.random.uniform(kw, (out_dim, in_dim), dtype=jnp.float32,
                                minval=-bound, maxval=bound)
    bias = jax.random.uniform(kb, (out_dim,), dtype=jnp.float32,
                              minval=-bound, maxval=bound)

    out = linear_relu(x, weight, bias)
    jax.block_until_ready(out)

    # Reference with the same bf16 input precision (f32 accumulation).
    xb = x.astype(jnp.bfloat16).astype(jnp.float32)
    wb = weight.astype(jnp.bfloat16).astype(jnp.float32)
    ref = jnp.maximum(xb @ wb.T + bias, 0.0)
    assert jnp.allclose(out, ref, atol=1e-2, rtol=1e-2), "mismatch vs reference"

    print("KERNEL_OK")
</pallas_src>

<mosaic_0001>
module attributes {stable_mosaic.version = 11 : i64} {
  func.func @linear_relu_kernel(%arg0: i32, %arg1: i32, %arg2: i32, %arg3: memref<8x512xbf16, #tpu.memory_space<vmem>>, %arg4: memref<512x256xbf16, #tpu.memory_space<vmem>>, %arg5: memref<1x256xf32, #tpu.memory_space<vmem>>, %arg6: memref<8x256xf32, #tpu.memory_space<vmem>>, %arg7: memref<8x256xf32, #tpu.memory_space<vmem>>) attributes {dimension_semantics = [#tpu.dimension_semantics<parallel>, #tpu.dimension_semantics<parallel>, #tpu.dimension_semantics<arbitrary>], iteration_bounds = array<i64: 1, 1, 1>, scalar_prefetch = 0 : i64, scratch_operands = 1 : i64, tpu.core_type = #tpu.core_type<tc>, window_params = [{transform_indices = @transform_0, window_bounds = array<i64: 8, 512>}, {transform_indices = @transform_1, window_bounds = array<i64: 512, 256>}, {transform_indices = @transform_2, window_bounds = array<i64: 1, 256>}, {transform_indices = @transform_3, window_bounds = array<i64: 8, 256>}]} {
    %c0_i32 = arith.constant 0 : i32
    %0 = arith.cmpi eq, %arg2, %c0_i32 : i32
    %1 = arith.extui %0 : i1 to i32
    %c0_i32_0 = arith.constant 0 : i32
    %2 = arith.cmpi ne, %1, %c0_i32_0 : i32
    scf.if %2 {
      %cst_10 = arith.constant 0.000000e+00 : f32
      %12 = vector.broadcast %cst_10 : f32 to vector<8x256xf32>
      %c0_11 = arith.constant 0 : index
      %c0_12 = arith.constant 0 : index
      %13 = vector.load %arg7[%c0_11, %c0_12] : memref<8x256xf32, #tpu.memory_space<vmem>>, vector<8x256xf32>
      tpu.vector_store %arg7[%c0_11, %c0_12], %12 {strides = array<i32>} : memref<8x256xf32, #tpu.memory_space<vmem>>, vector<8x256xf32>,
    } else {
    }
    %c0 = arith.constant 0 : index
    %c0_1 = arith.constant 0 : index
    %3 = vector.load %arg7[%c0, %c0_1] : memref<8x256xf32, #tpu.memory_space<vmem>>, vector<8x256xf32>
    %c0_2 = arith.constant 0 : index
    %c0_3 = arith.constant 0 : index
    %4 = vector.load %arg3[%c0_2, %c0_3] : memref<8x512xbf16, #tpu.memory_space<vmem>>, vector<8x512xbf16>
    %c0_4 = arith.constant 0 : index
    %c0_5 = arith.constant 0 : index
    %5 = vector.load %arg4[%c0_4, %c0_5] : memref<512x256xbf16, #tpu.memory_space<vmem>>, vector<512x256xbf16>
    %cst = arith.constant dense<0.000000e+00> : vector<8x256xf32>
    %6 = tpu.matmul %4, %5, %cst {dimension_numbers = #tpu.dot_dimension_numbers<[1], [0], [0], [1], [0, 0, 1, 1], [], []>} : vector<8x512xbf16>, vector<512x256xbf16>, vector<8x256xf32> -> vector<8x256xf32>
    %7 = arith.addf %3, %6 : vector<8x256xf32>
    %c0_6 = arith.constant 0 : index
    %c0_7 = arith.constant 0 : index
    %8 = vector.load %arg7[%c0_6, %c0_7] : memref<8x256xf32, #tpu.memory_space<vmem>>, vector<8x256xf32>
    tpu.vector_store %arg7[%c0_6, %c0_7], %7 {strides = array<i32>} : memref<8x256xf32, #tpu.memory_space<vmem>>, vector<8x256xf32>,
    %c0_i32_8 = arith.constant 0 : i32
    %9 = arith.cmpi eq, %arg2, %c0_i32_8 : i32
    %10 = arith.extui %9 : i1 to i32
    %c0_i32_9 = arith.constant 0 : i32
    %11 = arith.cmpi ne, %10, %c0_i32_9 : i32
    scf.if %11 {
      %c0_10 = arith.constant 0 : index
      %c0_11 = arith.constant 0 : index
      %12 = vector.load %arg7[%c0_10, %c0_11] : memref<8x256xf32, #tpu.memory_space<vmem>>, vector<8x256xf32>
      %c0_12 = arith.constant 0 : index
      %c0_13 = arith.constant 0 : index
      %13 = vector.load %arg5[%c0_12, %c0_13] : memref<1x256xf32, #tpu.memory_space<vmem>>, vector<1x256xf32>
      %14 = vector.broadcast %13 : vector<1x256xf32> to vector<8x256xf32>
      %15 = arith.addf %12, %14 : vector<8x256xf32>
      %cst_14 = arith.constant 0.000000e+00 : f32
      %16 = vector.broadcast %cst_14 : f32 to vector<8x256xf32>
      %17 = arith.maximumf %15, %16 : vector<8x256xf32>
      %c0_15 = arith.constant 0 : index
      %c0_16 = arith.constant 0 : index
      %18 = vector.load %arg6[%c0_15, %c0_16] : memref<8x256xf32, #tpu.memory_space<vmem>>, vector<8x256xf32>
      tpu.vector_store %arg6[%c0_15, %c0_16], %17 {strides = array<i32>} : memref<8x256xf32, #tpu.memory_space<vmem>>, vector<8x256xf32>,
    } else {
    }
    return
  }
  func.func @transform_0(%arg0: i32, %arg1: i32, %arg2: i32) -> (i32, i32) {
    %c0_i32 = arith.constant 0 : i32
    return %arg1, %arg2 : i32, i32
  }
  func.func @transform_1(%arg0: i32, %arg1: i32, %arg2: i32) -> (i32, i32) {
    %c0_i32 = arith.constant 0 : i32
    return %arg2, %arg0 : i32, i32
  }
  func.func @transform_2(%arg0: i32, %arg1: i32, %arg2: i32) -> (i32, i32) {
    %c0_i32 = arith.constant 0 : i32
    %c0_i32_0 = arith.constant 0 : i32
    return %c0_i32, %arg0 : i32, i32
  }
  func.func @transform_3(%arg0: i32, %arg1: i32, %arg2: i32) -> (i32, i32) {
    %c0_i32 = arith.constant 0 : i32
    return %arg1, %arg0 : i32, i32
  }
}

</mosaic_0001>

<llo_original>
// kernel: tpu_custom_call.1
$region0: #{tpu_custom_call.1}
  #allocation0 [shape = 'u32[]', space=smem, size = 0x4, offset = 0x4, fixed_abs, tag = 'smem constant byte address 0x4 - core index']
  #allocation1 [shape = 'u32[144,128]{1,0:T(1,128)}', space=vmem, size = 0x12000, scoped, tag = 'internal scratch']
  #allocation2 [shape = 'f32[8,256]{1,0:T(8,128)}', space=vmem, size = 0x2000, scoped, tag = 'scratch operand']
  %s0 = inlined_call_operand.hbm [shape: bf16[8,512], index: 0, kind: input, shape index: {}]
  %s1 = inlined_call_operand.hbm [shape: bf16[512,256], index: 1, kind: input, shape index: {}]
  %s2 = inlined_call_operand.vmem [shape: f32[1,256], index: 2, kind: input, shape index: {}]
  %s3 = inlined_call_operand.hbm [shape: f32[8,256], index: 3, kind: output, shape index: {}]
  %s4 = sld [smem:[#allocation0]]
  $region38: #{tpu_custom_call.1} parent=0
    _
  %s6 = ssub.s32 1, %s4
  %s7 = scalar_select 0, %s6, %s4
  $region1: #{tpu_custom_call.1} parent=0
    #allocation3 [shape = 'u8[8192]{0}', space=vmem, size = 0x2000, scoped, tag = 'input window, operand 0, single buffered']
    #allocation4 [shape = 's32[1]{0}', space=sflag, size = 0x4, scoped, tag = 'scoped memory for tpu_custom_call.1']
    #allocation5 [shape = 's32[1]{0}', space=sflag, size = 0x4, scoped, tag = 'scoped memory for tpu_custom_call.1']
    #allocation6 [shape = 'u8[262144]{0}', space=vmem, size = 0x40000, scoped, tag = 'input window, operand 1, single buffered']
    #allocation7 [shape = 's32[1]{0}', space=sflag, size = 0x4, scoped, tag = 'scoped memory for tpu_custom_call.1']
    #allocation8 [shape = 'u8[8192]{0}', space=vmem, size = 0x2000, scoped, tag = 'output window, operand 0, single buffered']
    %8 = vsyncpa [#allocation4], 0
    %9 = vsyncpa [#allocation7], 0
    %10 = vsyncpa [#allocation5], 0
    // Predicated region
    $region2: #{tpu_custom_call.1} parent=1 // pred_check
      _
    $region3: #{tpu_custom_call.1} parent=1 // pred_check_branch
      %12 = sbr.rel (0) target = $region5
    $region4: #{tpu_custom_call.1} parent=1 // pred_region
      %s14 = ssub.s32 256, 256
      %15 = vsyncadd [#allocation4], %s14
      %s17 = sshll.u32 [#allocation3], 4
      %s18 = int_to_ptr.vmem [resolvable:$true] %s17
      %20 = dma.hbm_to_vmem [thread:$0]  %s0, 256, %s18, [#allocation4]
    $region5: #{tpu_custom_call.1} parent=1 // pred_fallthru
      _
    // Predicated region
    $region6: #{tpu_custom_call.1} parent=1 // pred_check
      _
    $region7: #{tpu_custom_call.1} parent=1 // pred_check_branch
      %22 = sbr.rel (0) target = $region9
    $region8: #{tpu_custom_call.1} parent=1 // pred_region
      %s24 = ssub.s32 8192, 8192
      %25 = vsyncadd [#allocation7], %s24
      %s26 = sshll.u32 [#allocation6], 4
      %s27 = int_to_ptr.vmem [resolvable:$true] %s26
      %32 = dma.hbm_to_vmem [thread:$0]  %s1, 8192, %s27, [#allocation7], 128, 128, 8
    $region9: #{tpu_custom_call.1} parent=1 // pred_fallthru
      _
    // Predicated region
    $region10: #{tpu_custom_call.1} parent=1 // pred_check
      _
    $region11: #{tpu_custom_call.1} parent=1 // pred_check_branch
      %34 = sbr.rel (0) target = $region13
    $region12: #{tpu_custom_call.1} parent=1 // pred_region
      _
    $region13: #{tpu_custom_call.1} parent=1 // pred_fallthru
      _
    // Predicated region
    $region14: #{tpu_custom_call.1} parent=1 // pred_check
      _
    $region15: #{tpu_custom_call.1} parent=1 // pred_check_branch
      %36 = sbr.rel (0) target = $region17
    $region16: #{tpu_custom_call.1} parent=1 // pred_region
      %37 = dma.done [#allocation4], 256
    $region17: #{tpu_custom_call.1} parent=1 // pred_fallthru
      _
    // Predicated region
    $region18: #{tpu_custom_call.1} parent=1 // pred_check
      _
    $region19: #{tpu_custom_call.1} parent=1 // pred_check_branch
      %39 = sbr.rel (0) target = $region21
    $region20: #{tpu_custom_call.1} parent=1 // pred_region
      %40 = dma.done [#allocation7], 8192
    $region21: #{tpu_custom_call.1} parent=1 // pred_fallthru
      _
    %p41 = scmp.eq.s32.totalorder 0, 0
    // Predicated region
    $region22: #{tpu_custom_call.1} parent=1 // pred_check
      %p42 = pneg %p41
    $region23: #{tpu_custom_call.1} parent=1 // pred_check_branch
      %44 = sbr.rel (%p42) target = $region25
    $region24: #{tpu_custom_call.1} parent=1 // pred_region
      %45 = vst [vmem:[#allocation2] sm:$0xff] 0.0
      %46 = vst [vmem:[#allocation2 + $0x8] sm:$0xff] 0.0
    $region25: #{tpu_custom_call.1} parent=1 // pred_fallthru
      _
    %v47 = vld [vmem:[#allocation2] sm:$0xff]
    %v48 = vld [vmem:[#allocation2 + $0x8] sm:$0xff]
    %v49 = vld [vmem:[#allocation3] sm:$0xff]
    %v50 = vld [vmem:[#allocation3 + $0x8] sm:$0xff]
    %v51 = vld [vmem:[#allocation6] sm:$0xff]
    %v52 = vld [vmem:[#allocation6 + $0x8] sm:$0xff]
    %v53 = vld [vmem:[#allocation6 + $0x10] sm:$0xff]
    %v54 = vld [vmem:[#allocation6 + $0x18] sm:$0xff]
    %v55 = vld [vmem:[#allocation6 + $0x20] sm:$0xff]
    %v56 = vld [vmem:[#allocation6 + $0x28] sm:$0xff]
    %v57 = vld [vmem:[#allocation6 + $0x30] sm:$0xff]
    %v58 = vld [vmem:[#allocation6 + $0x38] sm:$0xff]
    %v59 = vld [vmem:[#allocation6 + $0x40] sm:$0xff]
    %v60 = vld [vmem:[#allocation6 + $0x48] sm:$0xff]
    %v61 = vld [vmem:[#allocation6 + $0x50] sm:$0xff]
    %v62 = vld [vmem:[#allocation6 + $0x58] sm:$0xff]
    %v63 = vld [vmem:[#allocation6 + $0x60] sm:$0xff]
    %v64 = vld [vmem:[#allocation6 + $0x68] sm:$0xff]
    %v65 = vld [vmem:[#allocation6 + $0x70] sm:$0xff]
    %v66 = vld [vmem:[#allocation6 + $0x78] sm:$0xff]
    %v67 = vld [vmem:[#allocation6 + $0x80] sm:$0xff]
    %v68 = vld [vmem:[#allocation6 + $0x88] sm:$0xff]
    %v69 = vld [vmem:[#allocation6 + $0x90] sm:$0xff]
    %v70 = vld [vmem:[#allocation6 + $0x98] sm:$0xff]
    %v71 = vld [vmem:[#allocation6 + $0xa0] sm:$0xff]
    %v72 = vld [vmem:[#allocation6 + $0xa8] sm:$0xff]
    %v73 = vld [vmem:[#allocation6 + $0xb0] sm:$0xff]
    %v74 = vld [vmem:[#allocation6 + $0xb8] sm:$0xff]
    %v75 = vld [vmem:[#allocation6 + $0xc0] sm:$0xff]
    %v76 = vld [vmem:[#allocation6 + $0xc8] sm:$0xff]
    %v77 = vld [vmem:[#allocation6 + $0xd0] sm:$0xff]
    %v78 = vld [vmem:[#allocation6 + $0xd8] sm:$0xff]
    %v79 = vld [vmem:[#allocation6 + $0xe0] sm:$0xff]
    %v80 = vld [vmem:[#allocation6 + $0xe8] sm:$0xff]
    %v81 = vld [vmem:[#allocation6 + $0xf0] sm:$0xff]
    %v82 = vld [vmem:[#allocation6 + $0xf8] sm:$0xff]
    %v83 = vld [vmem:[#allocation6 + $0x100] sm:$0xff]
    %v84 = vld [vmem:[#allocation6 + $0x108] sm:$0xff]
    %v85 = vld [vmem:[#allocation6 + $0x110] sm:$0xff]
    %v86 = vld [vmem:[#allocation6 + $0x118] sm:$0xff]
    %v87 = vld [vmem:[#allocation6 + $0x120] sm:$0xff]
    %v88 = vld [vmem:[#allocation6 + $0x128] sm:$0xff]
    %v89 = vld [vmem:[#allocation6 + $0x130] sm:$0xff]
    %v90 = vld [vmem:[#allocation6 + $0x138] sm:$0xff]
    %v91 = vld [vmem:[#allocation6 + $0x140] sm:$0xff]
    %v92 = vld [vmem:[#allocation6 + $0x148] sm:$0xff]
    %v93 = vld [vmem:[#allocation6 + $0x150] sm:$0xff]
    %v94 = vld [vmem:[#allocation6 + $0x158] sm:$0xff]
    %v95 = vld [vmem:[#allocation6 + $0x160] sm:$0xff]
    %v96 = vld [vmem:[#allocation6 + $0x168] sm:$0xff]
    %v97 = vld [vmem:[#allocation6 + $0x170] sm:$0xff]
    %v98 = vld [vmem:[#allocation6 + $0x178] sm:$0xff]
    %v99 = vld [vmem:[#allocation6 + $0x180] sm:$0xff]
    %v100 = vld [vmem:[#allocation6 + $0x188] sm:$0xff]
    %v101 = vld [vmem:[#allocation6 + $0x190] sm:$0xff]
    %v102 = vld [vmem:[#allocation6 + $0x198] sm:$0xff]
    %v103 = vld [vmem:[#allocation6 + $0x1a0] sm:$0xff]
    %v104 = vld [vmem:[#allocation6 + $0x1a8] sm:$0xff]
    %v105 = vld [vmem:[#allocation6 + $0x1b0] sm:$0xff]
    %v106 = vld [vmem:[#allocation6 + $0x1b8] sm:$0xff]
    %v107 = vld [vmem:[#allocation6 + $0x1c0] sm:$0xff]
    %v108 = vld [vmem:[#allocation6 + $0x1c8] sm:$0xff]
    %v109 = vld [vmem:[#allocation6 + $0x1d0] sm:$0xff]
    %v110 = vld [vmem:[#allocation6 + $0x1d8] sm:$0xff]
    %v111 = vld [vmem:[#allocation6 + $0x1e0] sm:$0xff]
    %v112 = vld [vmem:[#allocation6 + $0x1e8] sm:$0xff]
    %v113 = vld [vmem:[#allocation6 + $0x1f0] sm:$0xff]
    %v114 = vld [vmem:[#allocation6 + $0x1f8] sm:$0xff]
    %v117 = vunpack.c.l.b16 %v49
    %v118 = vunpack.c.h.b16 %v49
    %v119 = vunpack.c.l.b16 %v50
    %v120 = vunpack.c.h.b16 %v50
    %v121 = vpack.c.b16 %v117, %v117
    %v122 = vpack.c.b16 %v118, %v118
    %v123 = vpack.c.b16 %v119, %v119
    %v124 = vpack.c.b16 %v120, %v120
    %v193 = vunpack.c.l.b16 %v51
    %v194 = vunpack.c.h.b16 %v51
    %v195 = vunpack.c.l.b16 %v52
    %v196 = vunpack.c.h.b16 %v52
    %v197 = vunpack.c.l.b16 %v53
    %v198 = vunpack.c.h.b16 %v53
    %v199 = vunpack.c.l.b16 %v54
    %v200 = vunpack.c.h.b16 %v54
    %v201 = vunpack.c.l.b16 %v55
    %v202 = vunpack.c.h.b16 %v55
    %v203 = vunpack.c.l.b16 %v56
    %v204 = vunpack.c.h.b16 %v56
    %v205 = vunpack.c.l.b16 %v57
    %v206 = vunpack.c.h.b16 %v57
    %v207 = vunpack.c.l.b16 %v58
    %v208 = vunpack.c.h.b16 %v58
    %v209 = vunpack.c.l.b16 %v59
    %v210 = vunpack.c.h.b16 %v59
    %v211 = vunpack.c.l.b16 %v60
    %v212 = vunpack.c.h.b16 %v60
    %v213 = vunpack.c.l.b16 %v61
    %v214 = vunpack.c.h.b16 %v61
    %v215 = vunpack.c.l.b16 %v62
    %v216 = vunpack.c.h.b16 %v62
    %v217 = vunpack.c.l.b16 %v63
    %v218 = vunpack.c.h.b16 %v63
    %v219 = vunpack.c.l.b16 %v64
    %v220 = vunpack.c.h.b16 %v64
    %v221 = vunpack.c.l.b16 %v65
    %v222 = vunpack.c.h.b16 %v65
    %v223 = vunpack.c.l.b16 %v66
    %v224 = vunpack.c.h.b16 %v66
    %v225 = vunpack.c.l.b16 %v67
    %v226 = vunpack.c.h.b16 %v67
    %v227 = vunpack.c.l.b16 %v68
    %v228 = vunpack.c.h.b16 %v68
    %v229 = vunpack.c.l.b16 %v69
    %v230 = vunpack.c.h.b16 %v69
    %v231 = vunpack.c.l.b16 %v70
    %v232 = vunpack.c.h.b16 %v70
    %v233 = vunpack.c.l.b16 %v71
    %v234 = vunpack.c.h.b16 %v71
    %v235 = vunpack.c.l.b16 %v72
    %v236 = vunpack.c.h.b16 %v72
    %v237 = vunpack.c.l.b16 %v73
    %v238 = vunpack.c.h.b16 %v73
    %v239 = vunpack.c.l.b16 %v74
    %v240 = vunpack.c.h.b16 %v74
    %v241 = vunpack.c.l.b16 %v75
    %v242 = vunpack.c.h.b16 %v75
    %v243 = vunpack.c.l.b16 %v76
    %v244 = vunpack.c.h.b16 %v76
    %v245 = vunpack.c.l.b16 %v77
    %v246 = vunpack.c.h.b16 %v77
    %v247 = vunpack.c.l.b16 %v78
    %v248 = vunpack.c.h.b16 %v78
    %v249 = vunpack.c.l.b16 %v79
    %v250 = vunpack.c.h.b16 %v79
    %v251 = vunpack.c.l.b16 %v80
    %v252 = vunpack.c.h.b16 %v80
    %v253 = vunpack.c.l.b16 %v81
    %v254 = vunpack.c.h.b16 %v81
    %v255 = vunpack.c.l.b16 %v82
    %v256 = vunpack.c.h.b16 %v82
    %v257 = vunpack.c.l.b16 %v83
    %v258 = vunpack.c.h.b16 %v83
    %v259 = vunpack.c.l.b16 %v84
    %v260 = vunpack.c.h.b16 %v84
    %v261 = vunpack.c.l.b16 %v85
    %v262 = vunpack.c.h.b16 %v85
    %v263 = vunpack.c.l.b16 %v86
    %v264 = vunpack.c.h.b16 %v86
    %v265 = vunpack.c.l.b16 %v87
    %v266 = vunpack.c.h.b16 %v87
    %v267 = vunpack.c.l.b16 %v88
    %v268 = vunpack.c.h.b16 %v88
    %v269 = vunpack.c.l.b16 %v89
    %v270 = vunpack.c.h.b16 %v89
    %v271 = vunpack.c.l.b16 %v90
    %v272 = vunpack.c.h.b16 %v90
    %v273 = vunpack.c.l.b16 %v91
    %v274 = vunpack.c.h.b16 %v91
    %v275 = vunpack.c.l.b16 %v92
    %v276 = vunpack.c.h.b16 %v92
    %v277 = vunpack.c.l.b16 %v93
    %v278 = vunpack.c.h.b16 %v93
    %v279 = vunpack.c.l.b16 %v94
    %v280 = vunpack.c.h.b16 %v94
    %v281 = vunpack.c.l.b16 %v95
    %v282 = vunpack.c.h.b16 %v95
    %v283 = vunpack.c.l.b16 %v96
    %v284 = vunpack.c.h.b16 %v96
    %v285 = vunpack.c.l.b16 %v97
    %v286 = vunpack.c.h.b16 %v97
    %v287 = vunpack.c.l.b16 %v98
    %v288 = vunpack.c.h.b16 %v98
    %v289 = vunpack.c.l.b16 %v99
    %v290 = vunpack.c.h.b16 %v99
    %v291 = vunpack.c.l.b16 %v100
    %v292 = vunpack.c.h.b16 %v100
    %v293 = vunpack.c.l.b16 %v101
    %v294 = vunpack.c.h.b16 %v101
    %v295 = vunpack.c.l.b16 %v102
    %v296 = vunpack.c.h.b16 %v102
    %v297 = vunpack.c.l.b16 %v103
    %v298 = vunpack.c.h.b16 %v103
    %v299 = vunpack.c.l.b16 %v104
    %v300 = vunpack.c.h.b16 %v104
    %v301 = vunpack.c.l.b16 %v105
    %v302 = vunpack.c.h.b16 %v105
    %v303 = vunpack.c.l.b16 %v106
    %v304 = vunpack.c.h.b16 %v106
    %v305 = vunpack.c.l.b16 %v107
    %v306 = vunpack.c.h.b16 %v107
    %v307 = vunpack.c.l.b16 %v108
    %v308 = vunpack.c.h.b16 %v108
    %v309 = vunpack.c.l.b16 %v109
    %v310 = vunpack.c.h.b16 %v109
    %v311 = vunpack.c.l.b16 %v110
    %v312 = vunpack.c.h.b16 %v110
    %v313 = vunpack.c.l.b16 %v111
    %v314 = vunpack.c.h.b16 %v111
    %v315 = vunpack.c.l.b16 %v112
    %v316 = vunpack.c.h.b16 %v112
    %v317 = vunpack.c.l.b16 %v113
    %v318 = vunpack.c.h.b16 %v113
    %v319 = vunpack.c.l.b16 %v114
    %v320 = vunpack.c.h.b16 %v114
    %v321 = vpack.c.b16 %v195, %v193
    %v322 = vpack.c.b16 %v196, %v194
    %v323 = vpack.c.b16 %v199, %v197
    %v324 = vpack.c.b16 %v200, %v198
    %v325 = vpack.c.b16 %v203, %v201
    %v326 = vpack.c.b16 %v204, %v202
    %v327 = vpack.c.b16 %v207, %v205
    %v328 = vpack.c.b16 %v208, %v206
    %v329 = vpack.c.b16 %v211, %v209
    %v330 = vpack.c.b16 %v212, %v210
    %v331 = vpack.c.b16 %v215, %v213
    %v332 = vpack.c.b16 %v216, %v214
    %v333 = vpack.c.b16 %v219, %v217
    %v334 = vpack.c.b16 %v220, %v218
    %v335 = vpack.c.b16 %v223, %v221
    %v336 = vpack.c.b16 %v224, %v222
    %v337 = vpack.c.b16 %v227, %v225
    %v338 = vpack.c.b16 %v228, %v226
    %v339 = vpack.c.b16 %v231, %v229
    %v340 = vpack.c.b16 %v232, %v230
    %v341 = vpack.c.b16 %v235, %v233
    %v342 = vpack.c.b16 %v236, %v234
    %v343 = vpack.c.b16 %v239, %v237
    %v344 = vpack.c.b16 %v240, %v238
    %v345 = vpack.c.b16 %v243, %v241
    %v346 = vpack.c.b16 %v244, %v242
    %v347 = vpack.c.b16 %v247, %v245
    %v348 = vpack.c.b16 %v248, %v246
    %v349 = vpack.c.b16 %v251, %v249
    %v350 = vpack.c.b16 %v252, %v250
    %v351 = vpack.c.b16 %v255, %v253
    %v352 = vpack.c.b16 %v256, %v254
    %v353 = vpack.c.b16 %v259, %v257
    %v354 = vpack.c.b16 %v260, %v258
    %v355 = vpack.c.b16 %v263, %v261
    %v356 = vpack.c.b16 %v264, %v262
    %v357 = vpack.c.b16 %v267, %v265
    %v358 = vpack.c.b16 %v268, %v266
    %v359 = vpack.c.b16 %v271, %v269
    %v360 = vpack.c.b16 %v272, %v270
    %v361 = vpack.c.b16 %v275, %v273
    %v362 = vpack.c.b16 %v276, %v274
    %v363 = vpack.c.b16 %v279, %v277
    %v364 = vpack.c.b16 %v280, %v278
    %v365 = vpack.c.b16 %v283, %v281
    %v366 = vpack.c.b16 %v284, %v282
    %v367 = vpack.c.b16 %v287, %v285
    %v368 = vpack.c.b16 %v288, %v286
    %v369 = vpack.c.b16 %v291, %v289
    %v370 = vpack.c.b16 %v292, %v290
    %v371 = vpack.c.b16 %v295, %v293
    %v372 = vpack.c.b16 %v296, %v294
    %v373 = vpack.c.b16 %v299, %v297
    %v374 = vpack.c.b16 %v300, %v298
    %v375 = vpack.c.b16 %v303, %v301
    %v376 = vpack.c.b16 %v304, %v302
    %v377 = vpack.c.b16 %v307, %v305
    %v378 = vpack.c.b16 %v308, %v306
    %v379 = vpack.c.b16 %v311, %v309
    %v380 = vpack.c.b16 %v312, %v310
    %v381 = vpack.c.b16 %v315, %v313
    %v382 = vpack.c.b16 %v316, %v314
    %v383 = vpack.c.b16 %v319, %v317
    %v384 = vpack.c.b16 %v320, %v318
    %449 = vmatprep.subr.bf16.mxu0 %v336
    %450 = vmatpush1.bf16.msra.mxu0 %v335
    %451 = vmatprep.subr.bf16.mxu0 %v334
    %452 = vmatpush1.bf16.msra.mxu0 %v333
    %453 = vmatprep.subr.bf16.mxu0 %v332
    %454 = vmatpush1.bf16.msra.mxu0 %v331
    %455 = vmatprep.subr.bf16.mxu0 %v330
    %456 = vmatpush1.bf16.msra.mxu0 %v329
    %457 = vmatprep.subr.bf16.mxu0 %v328
    %458 = vmatpush1.bf16.msra.mxu0 %v327
    %459 = vmatprep.subr.bf16.mxu0 %v326
    %460 = vmatpush1.bf16.msra.mxu0 %v325
    %461 = vmatprep.subr.bf16.mxu0 %v324
    %462 = vmatpush1.bf16.msra.mxu0 %v323
    %463 = vmatprep.subr.bf16.mxu0 %v322
    %464 = vmatpush1.bf16.msra.mxu0 %v321
    %465 = vmatprep.subr.bf16.mxu0 %v352
    %466 = vmatpush2.bf16.msra.mxu0 %v351
    %467 = vmatprep.subr.bf16.mxu0 %v350
    %468 = vmatpush2.bf16.msra.mxu0 %v349
    %469 = vmatprep.subr.bf16.mxu0 %v348
    %470 = vmatpush2.bf16.msra.mxu0 %v347
    %471 = vmatprep.subr.bf16.mxu0 %v346
    %472 = vmatpush2.bf16.msra.mxu0 %v345
    %473 = vmatprep.subr.bf16.mxu0 %v344
    %474 = vmatpush2.bf16.msra.mxu0 %v343
    %475 = vmatprep.subr.bf16.mxu0 %v342
    %476 = vmatpush2.bf16.msra.mxu0 %v341
    %477 = vmatprep.subr.bf16.mxu0 %v340
    %478 = vmatpush2.bf16.msra.mxu0 %v339
    %479 = vmatprep.subr.bf16.mxu0 %v338
    %480 = vmatpush2.bf16.msra.mxu0 %v337
    %481 = vmatprep.mubr.bf16.mxu0 %v122
    %482 = vmatmul.mubr.bf16.gmra.mxu0 %v121
    %v483 = vpop.f32.mrf.mxu0
    %v484 = vadd.f32 0.0, %v483
    %v485 = vpop.f32.mrf.mxu0
    %v486 = vadd.f32 0.0, %v485
    %v487 = vpop.f32.mrf.mxu0
    %v488 = vpop.f32.mrf.mxu0
    %489 = vdwg.mxu0
    %490 = vmatprep.subr.bf16.mxu0 %v368
    %491 = vmatpush1.bf16.msra.mxu0 %v367
    %492 = vmatprep.subr.bf16.mxu0 %v366
    %493 = vmatpush1.bf16.msra.mxu0 %v365
    %494 = vmatprep.subr.bf16.mxu0 %v364
    %495 = vmatpush1.bf16.msra.mxu0 %v363
    %496 = vmatprep.subr.bf16.mxu0 %v362
    %497 = vmatpush1.bf16.msra.mxu0 %v361
    %498 = vmatprep.subr.bf16.mxu0 %v360
    %499 = vmatpush1.bf16.msra.mxu0 %v359
    %500 = vmatprep.subr.bf16.mxu0 %v358
    %501 = vmatpush1.bf16.msra.mxu0 %v357
    %502 = vmatprep.subr.bf16.mxu0 %v356
    %503 = vmatpush1.bf16.msra.mxu0 %v355
    %504 = vmatprep.subr.bf16.mxu0 %v354
    %505 = vmatpush1.bf16.msra.mxu0 %v353
    %506 = vmatprep.subr.bf16.mxu0 %v384
    %507 = vmatpush2.bf16.msra.mxu0 %v383
    %508 = vmatprep.subr.bf16.mxu0 %v382
    %509 = vmatpush2.bf16.msra.mxu0 %v381
    %510 = vmatprep.subr.bf16.mxu0 %v380
    %511 = vmatpush2.bf16.msra.mxu0 %v379
    %512 = vmatprep.subr.bf16.mxu0 %v378
    %513 = vmatpush2.bf16.msra.mxu0 %v377
    %514 = vmatprep.subr.bf16.mxu0 %v376
    %515 = vmatpush2.bf16.msra.mxu0 %v375
    %516 = vmatprep.subr.bf16.mxu0 %v374
    %517 = vmatpush2.bf16.msra.mxu0 %v373
    %518 = vmatprep.subr.bf16.mxu0 %v372
    %519 = vmatpush2.bf16.msra.mxu0 %v371
    %520 = vmatprep.subr.bf16.mxu0 %v370
    %521 = vmatpush2.bf16.msra.mxu0 %v369
    %522 = vmatprep.mubr.bf16.mxu0 %v124
    %523 = vmatmul.mubr.bf16.gmra.mxu0 %v123
    %v524 = vpop.f32.mrf.mxu0
    %v525 = vadd.f32 %v484, %v524
    %v526 = vpop.f32.mrf.mxu0
    %v527 = vadd.f32 %v486, %v526
    %v528 = vpop.f32.mrf.mxu0
    %v529 = vpop.f32.mrf.mxu0
    %530 = vdwg.mxu0
    %v531 = vadd.f32 %v47, %v525
    %v532 = vadd.f32 %v48, %v527
    %533 = vst [vmem:[#allocation2] sm:$0xff] %v531
    %534 = vst [vmem:[#allocation2 + $0x8] sm:$0xff] %v532
    // Predicated region
    $region26: #{tpu_custom_call.1} parent=1 // pred_check
      %p535 = pneg %p41
    $region27: #{tpu_custom_call.1} parent=1 // pred_check_branch
      %537 = sbr.rel (%p535) target = $region29
    $region28: #{tpu_custom_call.1} parent=1 // pred_region
      %v538 = vld [vmem:[#allocation2] sm:$0xff]
      %v539 = vld [vmem:[#allocation2 + $0x8] sm:$0xff]
      %v540 = vld [vmem:[%s2] sm:$0x3]
      %v542 = vlaneseq
      %v543 = vshrl.u32 %v542, 7
      %v544 = vsub.s32 0, %v543
      %v545 = vrot.slane %v540, %v544
      %v546 = vlaneseq
      %v547 = vshrl.u32 %v546, 7
      %v548 = vsub.s32 1, %v547
      %v549 = vrot.slane %v540, %v548
      %v552 = vadd.f32 %v538, %v545
      %v553 = vadd.f32 %v539, %v549
      %v554 = vmax.f32 %v552, 0.0
      %v555 = vmax.f32 %v553, 0.0
      %556 = vst [vmem:[#allocation8] sm:$0xff] %v554
      %557 = vst [vmem:[#allocation8 + $0x8] sm:$0xff] %v555
    $region29: #{tpu_custom_call.1} parent=1 // pred_fallthru
      _
    // Predicated region
    $region30: #{tpu_custom_call.1} parent=1 // pred_check
      _
    $region31: #{tpu_custom_call.1} parent=1 // pred_check_branch
      %559 = sbr.rel (0) target = $region33
    $region32: #{tpu_custom_call.1} parent=1 // pred_region
      %s561 = ssub.s32 256, 256
      %562 = vsyncadd [#allocation5], %s561
      %s564 = sshll.u32 [#allocation8], 4
      %s565 = int_to_ptr.vmem [resolvable:$true] %s564
      %567 = dma.vmem_to_hbm [thread:$0]  %s565, 256, %s3, [#allocation5]
    $region33: #{tpu_custom_call.1} parent=1 // pred_fallthru
      _
    // Predicated region
    $region34: #{tpu_custom_call.1} parent=1 // pred_check
      _
    $region35: #{tpu_custom_call.1} parent=1 // pred_check_branch
      %569 = sbr.rel (0) target = $region37
    $region36: #{tpu_custom_call.1} parent=1 // pred_region
      %570 = dma.done [#allocation5], 256
    $region37: #{tpu_custom_call.1} parent=1 // pred_fallthru
      _
    %571 = vsyncpa [#allocation4], 1
    %572 = vsyncpa [#allocation7], 1
    %573 = vsyncpa [#allocation5], 1

</llo_original>
